<compile_context>
chip_gen: v7x
topology: tpu7x:2x2x1
jax: 0.10.0
libtpu: 0.0.40
codegen_flags: <defaults>
</compile_context>

<pallas_src>
import functools

import jax
import jax.numpy as jnp
from jax.experimental import pallas as pl
from jax.experimental.pallas import tpu as pltpu

_LANE = 128
_SUBLANE = 8


def _round_up(x, m):
    return (x + m - 1) // m * m


def _mask_reg_loss_kernel(y_ref, label_ref, out_ref, s_my_ref, s_m_ref, *,
                          hw, t_hw, alpha, beta, epsilon):
    t = pl.program_id(1)
    nt = pl.num_programs(1)

    @pl.when(t == 0)
    def _():
        s_my_ref[...] = jnp.zeros_like(s_my_ref)
        s_m_ref[...] = jnp.zeros_like(s_m_ref)

    y = y_ref[...].astype(jnp.float32)                         # (1, C, T_HW)

    def accumulate(valid):
        # valid: None (no masking) or a (1, 1, T_HW) bool mask (broadcast over C).
        yy = y if valid is None else jnp.where(valid, y, 0.0)
        # Channel softmax: reduce over C (sublane axis); HW stays lane-dense.
        mx = jnp.max(yy, axis=1, keepdims=True)                # (1, 1, T_HW)
        e = jnp.exp(yy - mx)
        z = jnp.sum(e, axis=1, keepdims=True)                  # (1, 1, T_HW)
        m = e * pl.reciprocal(z)                               # exact recip on EUP
        if valid is not None:
            m = jnp.where(valid, m, 0.0)                       # keep pad out of sums
        # Spatial partial sums (lane reduction), accumulated across HW tiles.
        s_my_ref[...] += jnp.sum(m * yy, axis=2, keepdims=True)   # (1, C, 1)
        s_m_ref[...] += jnp.sum(m, axis=2, keepdims=True)          # (1, C, 1)

    ragged = (hw % t_hw) != 0                                  # static Python bool
    if not ragged:
        accumulate(None)
    else:
        # Unmasked fast path on all full tiles; masking only on the ragged tail.
        @pl.when(t != nt - 1)
        def _():
            accumulate(None)

        @pl.when(t == nt - 1)
        def _():
            col = jax.lax.broadcasted_iota(jnp.int32, (1, 1, t_hw), 2)
            accumulate(col < (hw - t * t_hw))

    @pl.when(t == nt - 1)
    def _():
        s_my = s_my_ref[...]
        s_m = s_m_ref[...]
        y_ngwp = s_my / s_m + epsilon
        m_b = s_m * (1.0 / hw)
        omb = 1.0 - m_b
        if float(beta) == int(beta) and int(beta) >= 0:
            # exact integer power: VPU muls only, no exp/log, no NaN hazard
            pw = jnp.ones_like(omb)
            for _ in range(int(beta)):
                pw = pw * omb
        else:
            pw = jnp.maximum(omb, 0.0) ** beta
        y_size = pw * jnp.log(alpha + m_b)
        y_pred = y_ngwp + y_size                               # (1, C, 1)

        p = jax.nn.sigmoid(y_pred)
        lab = label_ref[...].astype(jnp.float32)               # (1, C, 1)
        # torch.nn.functional.binary_cross_entropy clamps log terms at -100
        log_p = jnp.maximum(jnp.log(p), -100.0)
        log_1mp = jnp.maximum(jnp.log(1.0 - p), -100.0)
        out_ref[...] = -(lab * log_p + (1.0 - lab) * log_1mp)


def _vmem_capacity_bytes():
    try:
        return int(pltpu.get_tpu_info().vmem_capacity_bytes)
    except Exception:
        return 64 << 20            # conservative fallback (v7x per-TC physical)


def _choose_t_hw(c, hw, vmem_cap):
    """Pick the HW tile (T_N is fixed to 1 so the batch axis stays parallel)."""
    c_pad = _round_up(c, _SUBLANE)                 # sublane padding is physical
    # Per-block padded byte budget: ~8 MiB on 64 MiB-VMEM parts (v7x),
    # ~16 MiB on the 128 MiB parts (v5e/v6e) to amortize grid-step overhead.
    target = (8 << 20) if vmem_cap <= (64 << 20) else (16 << 20)
    full_bytes = c_pad * _round_up(hw, _LANE) * 4
    if full_bytes <= target or hw <= _LANE:
        return hw                                  # whole image in a single tile
    t_hw = (target // (c_pad * 4)) // _LANE * _LANE
    t_hw = max(_LANE, int(t_hw))
    return hw if t_hw >= hw else t_hw


def mask_reg_loss_v2(label, y_mask, *, alpha=0.01, beta=3, epsilon=1e-06):
    """label: (N, C) float, y_mask: (N, C, H, W) float (NCHW)."""
    n, c, h, w = y_mask.shape
    hw = h * w
    y3 = y_mask.reshape(n, c, hw)                  # free reshape, native layout
    label3 = label.reshape(n, c, 1)

    vmem_cap = _vmem_capacity_bytes()
    t_hw = _choose_t_hw(c, hw, vmem_cap)
    num_t = pl.cdiv(hw, t_hw)

    # Padded VMEM accounting: C rounds up to 8 sublanes, T_HW to 128 lanes.
    c_pad = _round_up(c, _SUBLANE)
    y_block_padded = c_pad * _round_up(t_hw, _LANE) * 4
    vmem_limit = 2 * y_block_padded + (4 << 20)    # double-buffered y + headroom
    vmem_limit = int(min(max(vmem_limit, 16 << 20), (vmem_cap * 3) // 4))

    kernel = functools.partial(
        _mask_reg_loss_kernel,
        hw=int(hw), t_hw=int(t_hw),
        alpha=float(alpha), beta=beta, epsilon=float(epsilon),
    )

    partials = pl.pallas_call(
        kernel,
        out_shape=jax.ShapeDtypeStruct((n, c, 1), jnp.float32),
        grid_spec=pltpu.PrefetchScalarGridSpec(
            num_scalar_prefetch=0,
            grid=(n, num_t),
            in_specs=[
                pl.BlockSpec((1, c, t_hw), lambda nb, t: (nb, 0, t)),
                pl.BlockSpec((1, c, 1), lambda nb, t: (nb, 0, 0)),
            ],
            out_specs=pl.BlockSpec((1, c, 1), lambda nb, t: (nb, 0, 0)),
            scratch_shapes=[
                pltpu.VMEM((1, c, 1), jnp.float32),   # sum(m * y) accumulator
                pltpu.VMEM((1, c, 1), jnp.float32),   # sum(m) accumulator
            ],
        ),
        compiler_params=pltpu.CompilerParams(
            dimension_semantics=("parallel", "arbitrary"),
            vmem_limit_bytes=vmem_limit,
        ),
    )(y3, label3)

    # per-(n, c) BCE partials -> mean over N*C in the wrapper
    return jnp.mean(partials)


def _reference(label, y_mask, alpha=0.01, beta=3, epsilon=1e-06):
    y = y_mask.astype(jnp.float32)
    m = jax.nn.softmax(y, axis=1)
    y_ngwp = jnp.sum(m * y, axis=(-2, -1)) / jnp.sum(m, axis=(-2, -1)) + epsilon
    h, w = y.shape[-2:]
    m_b = jnp.sum(m, axis=(-2, -1)) / (h * w)
    y_size = (1.0 - m_b) ** beta * jnp.log(alpha + m_b)
    p = jax.nn.sigmoid(y_ngwp + y_size)
    bce = -(label * jnp.maximum(jnp.log(p), -100.0)
            + (1.0 - label) * jnp.maximum(jnp.log(1.0 - p), -100.0))
    return jnp.mean(bce)


if __name__ == "__main__":
    key = jax.random.PRNGKey(0)
    k1, k2 = jax.random.split(key)

    N, C, H, W = 2, 4, 16, 16
    y_mask = jax.random.normal(k1, (N, C, H, W), dtype=jnp.float32)
    label = jax.random.uniform(k2, (N, C), dtype=jnp.float32)

    loss = mask_reg_loss_v2(label, y_mask)
    loss = jax.block_until_ready(loss)

    ref = _reference(label, y_mask)
    assert jnp.allclose(loss, ref, rtol=1e-5, atol=1e-5), (loss, ref)

    print("KERNEL_OK")
</pallas_src>

<mosaic_0001>
module attributes {stable_mosaic.version = 11 : i64} {
  func.func @_mask_reg_loss_kernel(%arg0: i32, %arg1: i32, %arg2: memref<1x4x256xf32, #tpu.memory_space<vmem>>, %arg3: memref<1x4x1xf32, #tpu.memory_space<vmem>>, %arg4: memref<1x4x1xf32, #tpu.memory_space<vmem>>, %arg5: memref<1x4x1xf32, #tpu.memory_space<vmem>>, %arg6: memref<1x4x1xf32, #tpu.memory_space<vmem>>) attributes {dimension_semantics = [#tpu.dimension_semantics<parallel>, #tpu.dimension_semantics<arbitrary>], iteration_bounds = array<i64: 2, 1>, scalar_prefetch = 0 : i64, scratch_operands = 2 : i64, tpu.core_type = #tpu.core_type<tc>, window_params = [{transform_indices = @transform_0, window_bounds = array<i64: 1, 4, 256>}, {transform_indices = @transform_1, window_bounds = array<i64: 1, 4, 1>}, {transform_indices = @transform_2, window_bounds = array<i64: 1, 4, 1>}]} {
    %c0_i32 = arith.constant 0 : i32
    %0 = arith.cmpi eq, %arg1, %c0_i32 : i32
    %1 = arith.extui %0 : i1 to i32
    %c0_i32_0 = arith.constant 0 : i32
    %2 = arith.cmpi ne, %1, %c0_i32_0 : i32
    scf.if %2 {
      %cst_20 = arith.constant 0.000000e+00 : f32
      %28 = vector.broadcast %cst_20 : f32 to vector<1x4x1xf32>
      %c0_21 = arith.constant 0 : index
      %c0_22 = arith.constant 0 : index
      %c0_23 = arith.constant 0 : index
      %29 = vector.load %arg5[%c0_21, %c0_22, %c0_23] : memref<1x4x1xf32, #tpu.memory_space<vmem>>, vector<1x4x1xf32>
      tpu.vector_store %arg5[%c0_21, %c0_22, %c0_23], %28 {strides = array<i32>} : memref<1x4x1xf32, #tpu.memory_space<vmem>>, vector<1x4x1xf32>,
      %cst_24 = arith.constant 0.000000e+00 : f32
      %30 = vector.broadcast %cst_24 : f32 to vector<1x4x1xf32>
      %c0_25 = arith.constant 0 : index
      %c0_26 = arith.constant 0 : index
      %c0_27 = arith.constant 0 : index
      %31 = vector.load %arg6[%c0_25, %c0_26, %c0_27] : memref<1x4x1xf32, #tpu.memory_space<vmem>>, vector<1x4x1xf32>
      tpu.vector_store %arg6[%c0_25, %c0_26, %c0_27], %30 {strides = array<i32>} : memref<1x4x1xf32, #tpu.memory_space<vmem>>, vector<1x4x1xf32>,
    } else {
    }
    %c0 = arith.constant 0 : index
    %c0_1 = arith.constant 0 : index
    %c0_2 = arith.constant 0 : index
    %3 = vector.load %arg2[%c0, %c0_1, %c0_2] : memref<1x4x256xf32, #tpu.memory_space<vmem>>, vector<1x4x256xf32>
    %cst = arith.constant dense<0xFF800000> : vector<1x256xf32>
    %4 = vector.multi_reduction <maximumf>, %3, %cst [1] : vector<1x4x256xf32> to vector<1x256xf32>
    %5 = vector.shape_cast %4 : vector<1x256xf32> to vector<1x1x256xf32>
    %6 = vector.broadcast %5 : vector<1x1x256xf32> to vector<1x4x256xf32>
    %7 = arith.subf %3, %6 : vector<1x4x256xf32>
    %8 = math.exp %7 : vector<1x4x256xf32>
    %cst_3 = arith.constant dense<0.000000e+00> : vector<1x256xf32>
    %9 = vector.multi_reduction <add>, %8, %cst_3 [1] : vector<1x4x256xf32> to vector<1x256xf32>
    %10 = vector.shape_cast %9 : vector<1x256xf32> to vector<1x1x256xf32>
    %11 = tpu.reciprocal %10 : vector<1x1x256xf32> -> vector<1x1x256xf32>
    %12 = vector.broadcast %11 : vector<1x1x256xf32> to vector<1x4x256xf32>
    %13 = arith.mulf %8, %12 : vector<1x4x256xf32>
    %c0_4 = arith.constant 0 : index
    %c0_5 = arith.constant 0 : index
    %c0_6 = arith.constant 0 : index
    %14 = vector.load %arg5[%c0_4, %c0_5, %c0_6] : memref<1x4x1xf32, #tpu.memory_space<vmem>>, vector<1x4x1xf32>
    %15 = arith.mulf %13, %3 : vector<1x4x256xf32>
    %cst_7 = arith.constant dense<0.000000e+00> : vector<1x4xf32>
    %16 = vector.multi_reduction <add>, %15, %cst_7 [2] : vector<1x4x256xf32> to vector<1x4xf32>
    %17 = vector.shape_cast %16 : vector<1x4xf32> to vector<1x4x1xf32>
    %18 = arith.addf %14, %17 : vector<1x4x1xf32>
    %c0_8 = arith.constant 0 : index
    %c0_9 = arith.constant 0 : index
    %c0_10 = arith.constant 0 : index
    %19 = vector.load %arg5[%c0_8, %c0_9, %c0_10] : memref<1x4x1xf32, #tpu.memory_space<vmem>>, vector<1x4x1xf32>
    tpu.vector_store %arg5[%c0_8, %c0_9, %c0_10], %18 {strides = array<i32>} : memref<1x4x1xf32, #tpu.memory_space<vmem>>, vector<1x4x1xf32>,
    %c0_11 = arith.constant 0 : index
    %c0_12 = arith.constant 0 : index
    %c0_13 = arith.constant 0 : index
    %20 = vector.load %arg6[%c0_11, %c0_12, %c0_13] : memref<1x4x1xf32, #tpu.memory_space<vmem>>, vector<1x4x1xf32>
    %cst_14 = arith.constant dense<0.000000e+00> : vector<1x4xf32>
    %21 = vector.multi_reduction <add>, %13, %cst_14 [2] : vector<1x4x256xf32> to vector<1x4xf32>
    %22 = vector.shape_cast %21 : vector<1x4xf32> to vector<1x4x1xf32>
    %23 = arith.addf %20, %22 : vector<1x4x1xf32>
    %c0_15 = arith.constant 0 : index
    %c0_16 = arith.constant 0 : index
    %c0_17 = arith.constant 0 : index
    %24 = vector.load %arg6[%c0_15, %c0_16, %c0_17] : memref<1x4x1xf32, #tpu.memory_space<vmem>>, vector<1x4x1xf32>
    tpu.vector_store %arg6[%c0_15, %c0_16, %c0_17], %23 {strides = array<i32>} : memref<1x4x1xf32, #tpu.memory_space<vmem>>, vector<1x4x1xf32>,
    %c0_i32_18 = arith.constant 0 : i32
    %25 = arith.cmpi eq, %arg1, %c0_i32_18 : i32
    %26 = arith.extui %25 : i1 to i32
    %c0_i32_19 = arith.constant 0 : i32
    %27 = arith.cmpi ne, %26, %c0_i32_19 : i32
    scf.if %27 {
      %c0_20 = arith.constant 0 : index
      %c0_21 = arith.constant 0 : index
      %c0_22 = arith.constant 0 : index
      %28 = vector.load %arg5[%c0_20, %c0_21, %c0_22] : memref<1x4x1xf32, #tpu.memory_space<vmem>>, vector<1x4x1xf32>
      %c0_23 = arith.constant 0 : index
      %c0_24 = arith.constant 0 : index
      %c0_25 = arith.constant 0 : index
      %29 = vector.load %arg6[%c0_23, %c0_24, %c0_25] : memref<1x4x1xf32, #tpu.memory_space<vmem>>, vector<1x4x1xf32>
      %30 = arith.divf %28, %29 : vector<1x4x1xf32>
      %cst_26 = arith.constant 9.99999997E-7 : f32
      %31 = vector.broadcast %cst_26 : f32 to vector<1x4x1xf32>
      %32 = arith.addf %30, %31 : vector<1x4x1xf32>
      %cst_27 = arith.constant 3.906250e-03 : f32
      %33 = vector.broadcast %cst_27 : f32 to vector<1x4x1xf32>
      %34 = arith.mulf %29, %33 : vector<1x4x1xf32>
      %cst_28 = arith.constant 1.000000e+00 : f32
      %35 = vector.broadcast %cst_28 : f32 to vector<1x4x1xf32>
      %36 = arith.subf %35, %34 : vector<1x4x1xf32>
      %cst_29 = arith.constant 1.000000e+00 : f32
      %37 = vector.broadcast %cst_29 : f32 to vector<1x4x1xf32>
      %38 = arith.mulf %37, %36 : vector<1x4x1xf32>
      %39 = arith.mulf %38, %36 : vector<1x4x1xf32>
      %40 = arith.mulf %39, %36 : vector<1x4x1xf32>
      %cst_30 = arith.constant 0.00999999977 : f32
      %41 = vector.broadcast %cst_30 : f32 to vector<1x4x1xf32>
      %42 = arith.addf %41, %34 : vector<1x4x1xf32>
      %43 = math.log %42 : vector<1x4x1xf32>
      %44 = arith.mulf %40, %43 : vector<1x4x1xf32>
      %45 = arith.addf %32, %44 : vector<1x4x1xf32>
      %46 = arith.negf %45 : vector<1x4x1xf32>
      %47 = math.exp %46 : vector<1x4x1xf32>
      %cst_31 = arith.constant 1.000000e+00 : f32
      %48 = vector.broadcast %cst_31 : f32 to vector<1x4x1xf32>
      %49 = arith.addf %48, %47 : vector<1x4x1xf32>
      %50 = arith.divf %48, %49 : vector<1x4x1xf32>
      %c0_32 = arith.constant 0 : index
      %c0_33 = arith.constant 0 : index
      %c0_34 = arith.constant 0 : index
      %51 = vector.load %arg3[%c0_32, %c0_33, %c0_34] : memref<1x4x1xf32, #tpu.memory_space<vmem>>, vector<1x4x1xf32>
      %52 = math.log %50 : vector<1x4x1xf32>
      %cst_35 = arith.constant -1.000000e+02 : f32
      %53 = vector.broadcast %cst_35 : f32 to vector<1x4x1xf32>
      %54 = arith.maximumf %52, %53 : vector<1x4x1xf32>
      %cst_36 = arith.constant 1.000000e+00 : f32
      %55 = vector.broadcast %cst_36 : f32 to vector<1x4x1xf32>
      %56 = arith.subf %55, %50 : vector<1x4x1xf32>
      %57 = math.log %56 : vector<1x4x1xf32>
      %cst_37 = arith.constant -1.000000e+02 : f32
      %58 = vector.broadcast %cst_37 : f32 to vector<1x4x1xf32>
      %59 = arith.maximumf %57, %58 : vector<1x4x1xf32>
      %60 = arith.mulf %51, %54 : vector<1x4x1xf32>
      %cst_38 = arith.constant 1.000000e+00 : f32
      %61 = vector.broadcast %cst_38 : f32 to vector<1x4x1xf32>
      %62 = arith.subf %61, %51 : vector<1x4x1xf32>
      %63 = arith.mulf %62, %59 : vector<1x4x1xf32>
      %64 = arith.addf %60, %63 : vector<1x4x1xf32>
      %cst_39 = arith.constant 0.000000e+00 : f32
      %65 = vector.broadcast %cst_39 : f32 to vector<1x4x1xf32>
      %66 = arith.subf %65, %64 : vector<1x4x1xf32>
      %c0_40 = arith.constant 0 : index
      %c0_41 = arith.constant 0 : index
      %c0_42 = arith.constant 0 : index
      %67 = vector.load %arg4[%c0_40, %c0_41, %c0_42] : memref<1x4x1xf32, #tpu.memory_space<vmem>>, vector<1x4x1xf32>
      tpu.vector_store %arg4[%c0_40, %c0_41, %c0_42], %66 {strides = array<i32>} : memref<1x4x1xf32, #tpu.memory_space<vmem>>, vector<1x4x1xf32>,
    } else {
    }
    return
  }
  func.func @transform_0(%arg0: i32, %arg1: i32) -> (i32, i32, i32) {
    %c0_i32 = arith.constant 0 : i32
    %c0_i32_0 = arith.constant 0 : i32
    return %arg0, %c0_i32, %arg1 : i32, i32, i32
  }
  func.func @transform_1(%arg0: i32, %arg1: i32) -> (i32, i32, i32) {
    %c0_i32 = arith.constant 0 : i32
    %c0_i32_0 = arith.constant 0 : i32
    %c0_i32_1 = arith.constant 0 : i32
    return %arg0, %c0_i32, %c0_i32_0 : i32, i32, i32
  }
  func.func @transform_2(%arg0: i32, %arg1: i32) -> (i32, i32, i32) {
    %c0_i32 = arith.constant 0 : i32
    %c0_i32_0 = arith.constant 0 : i32
    %c0_i32_1 = arith.constant 0 : i32
    return %arg0, %c0_i32, %c0_i32_0 : i32, i32, i32
  }
}

</mosaic_0001>

<llo_original>
// kernel: tpu_custom_call.1
$region0: #{tpu_custom_call.1}
  #allocation0 [shape = 'u32[]', space=smem, size = 0x4, offset = 0x4, fixed_abs, tag = 'smem constant byte address 0x4 - core index']
  #allocation1 [shape = 'u32[144,128]{1,0:T(1,128)}', space=vmem, size = 0x12000, scoped, tag = 'internal scratch']
  #allocation2 [shape = 'f32[1,4,1]{2,1,0:T(4,128)}', space=vmem, size = 0x800, scoped, tag = 'scratch operand']
  #allocation3 [shape = 'f32[1,4,1]{2,1,0:T(4,128)}', space=vmem, size = 0x800, scoped, tag = 'scratch operand']
  %s0 = inlined_call_operand.hbm [shape: f32[2,4,256], index: 0, kind: input, shape index: {}]
  %s1 = inlined_call_operand.vmem [shape: f32[2,4,1], index: 1, kind: input, shape index: {}]
  %s2 = inlined_call_operand.vmem [shape: f32[2,4,1], index: 2, kind: output, shape index: {}]
  %s3 = sld [smem:[#allocation0]]
  $region53: #{tpu_custom_call.1} parent=0
    _
  %s5 = ssub.s32 1, %s3
  %s6 = scalar_select 0, %s5, %s3
  $region1: #{tpu_custom_call.1} parent=0
    #allocation4 [shape = 'u8[8192]{0}', space=vmem, size = 0x2000, scoped, tag = 'input window, operand 0']
    #allocation5 [shape = 's32[2]{0}', space=sflag, size = 0x8, scoped, tag = 'scoped memory for tpu_custom_call.1']
    %7 = vsyncpa [#allocation5], 0
    %s8 = scalar_lea.sflag [#allocation5], 1
    %9 = vsyncpa %s8, 0
    loop: start=0, step=1, limit=4
    $region2: #{tpu_custom_call.1} parent=1 // loop_pre_header
      _
    $region3: #{tpu_custom_call.1} parent=1 // loop_header
      %s11 = sphi 0, %s15
      %p12 = scmp.ge.s32.totalorder %s11, 4
      %s18 = sphi 0, %s30
      %s19 = sphi 0, %s26
      %s20 = sphi 0, %s18
      %s21 = sphi 0, %s19
      %s22 = sphi 0, %s20
      %s23 = sphi 0, %s21
      %s35 = sphi 0, %s37
      %s38 = sphi 0, %s35
      %s39 = sphi 0, %s38
      %s55 = sphi 0, %s39
      %s61 = sphi 0, %s63
      %s64 = sphi 0, %s61
      %s65 = sphi 0, %s64
      %s81 = sphi 0, %s65
      %s87 = sphi 0, %s89
      %s90 = sphi 0, %s87
      %s91 = sphi 0, %s90
      %s107 = sphi 0, %s91
    $region4: #{tpu_custom_call.1} parent=1 // loop_header_branch
      %14 = sbr.rel (%p12) target = $region8
    $region5: #{tpu_custom_call.1} parent=1 // loop_body
      %s16 = ssub.s32 %s11, 1
      %s17 = ssub.s32 %s11, 2
      %s24 = sadd.s32 1, %s19
      %p25 = scmp.ge.s32.totalorder %s24, 1
      %s26 = scalar_select %p25, 0, %s24
      %s27 = sadd.s32 1, %s18
      %s28 = scalar_select %p25, %s27, %s18
      %p29 = scmp.ge.s32.totalorder %s28, 2
      %s30 = scalar_select %p29, 0, %s28
      %s31 = ssub.s32 %s18, %s30
      %s32 = ssub.s32 %s19, %s26
      %s33 = sor.u32 %s31, %s32
      %p34 = scmp.eq.s32.totalorder %s33, 0
      %s36 = sadd.s32 %s35, 1
      %s37 = scalar_select %p34, %s35, %s36
      %p40 = pneg %p34
      %p41 = scmp.eq.s32.totalorder %s11, 1
      %p42 = por %p40, %p41
      %p43 = scmp.ne.s32.totalorder %s35, %s38
      %p44 = scmp.eq.s32.totalorder %s11, 0
      %p45 = por %p43, %p44
      %p46 = scmp.ne.s32.totalorder %s35, %s38
      %p47 = scmp.eq.s32.totalorder %s16, 1
      %p48 = por %p46, %p47
      %p49 = scmp.ne.s32.totalorder %s38, %s39
      %p50 = scmp.eq.s32.totalorder %s16, 0
      %p51 = por %p49, %p50
      %p52 = scmp.ne.s32.totalorder %s38, %s39
      %p53 = scmp.eq.s32.totalorder %s17, 1
      %p54 = por %p52, %p53
      %p56 = scmp.ne.s32.totalorder %s39, %s55
      %p57 = scmp.eq.s32.totalorder %s17, 0
      %p58 = por %p56, %p57
      %s59 = ssub.s32 %s18, %s30
      %p60 = scmp.eq.s32.totalorder %s59, 0
      %s62 = sadd.s32 %s61, 1
      %s63 = scalar_select %p60, %s61, %s62
      %p66 = pneg %p60
      %p67 = scmp.eq.s32.totalorder %s11, 1
      %p68 = por %p66, %p67
      %p69 = scmp.ne.s32.totalorder %s61, %s64
      %p70 = scmp.eq.s32.totalorder %s11, 0
      %p71 = por %p69, %p70
      %p72 = scmp.ne.s32.totalorder %s61, %s64
      %p73 = scmp.eq.s32.totalorder %s16, 1
      %p74 = por %p72, %p73
      %p75 = scmp.ne.s32.totalorder %s64, %s65
      %p76 = scmp.eq.s32.totalorder %s16, 0
      %p77 = por %p75, %p76
      %p78 = scmp.ne.s32.totalorder %s64, %s65
      %p79 = scmp.eq.s32.totalorder %s17, 1
      %p80 = por %p78, %p79
      %p82 = scmp.ne.s32.totalorder %s65, %s81
      %p83 = scmp.eq.s32.totalorder %s17, 0
      %p84 = por %p82, %p83
      %s85 = ssub.s32 %s18, %s30
      %p86 = scmp.eq.s32.totalorder %s85, 0
      %s88 = sadd.s32 %s87, 1
      %s89 = scalar_select %p86, %s87, %s88
      %p92 = pneg %p86
      %p93 = scmp.eq.s32.totalorder %s11, 1
      %p94 = por %p92, %p93
      %p95 = scmp.ne.s32.totalorder %s87, %s90
      %p96 = scmp.eq.s32.totalorder %s11, 0
      %p97 = por %p95, %p96
      %p98 = scmp.ne.s32.totalorder %s87, %s90
      %p99 = scmp.eq.s32.totalorder %s16, 1
      %p100 = por %p98, %p99
      %p101 = scmp.ne.s32.totalorder %s90, %s91
      %p102 = scmp.eq.s32.totalorder %s16, 0
      %p103 = por %p101, %p102
      %p104 = scmp.ne.s32.totalorder %s90, %s91
      %p105 = scmp.eq.s32.totalorder %s17, 1
      %p106 = por %p104, %p105
      %p108 = scmp.ne.s32.totalorder %s91, %s107
      %p109 = scmp.eq.s32.totalorder %s17, 0
      %p110 = por %p108, %p109
      %p111 = scmp.le.s32.totalorder 1, %s11
      %p112 = scmp.lt.s32.totalorder %s11, 3
      %p113 = pnand %p111, %p112
      %p114 = pneg %p113
      // Predicated region
      $region9: #{tpu_custom_call.1} parent=5 // pred_check
        _
      $region10: #{tpu_custom_call.1} parent=5 // pred_check_branch
        %116 = sbr.rel (%p113) target = $region12
      $region11: #{tpu_custom_call.1} parent=5 // pred_region
        %s117 = ssub.s32 %s11, 1
      $region12: #{tpu_custom_call.1} parent=5 // pred_fallthru
        _
      %p118 = scmp.lt.s32.totalorder %s11, 2
      // Predicated region
      $region13: #{tpu_custom_call.1} parent=5 // pred_check
        %p119 = pneg %p118
      $region14: #{tpu_custom_call.1} parent=5 // pred_check_branch
        %121 = sbr.rel (%p119) target = $region16
      $region15: #{tpu_custom_call.1} parent=5 // pred_region
        // Predicated region
        $region17: #{tpu_custom_call.1} parent=15 // pred_check
          %p122 = pneg %p45
        $region18: #{tpu_custom_call.1} parent=15 // pred_check_branch
          %124 = sbr.rel (%p122) target = $region20
        $region19: #{tpu_custom_call.1} parent=15 // pred_region
          %s125 = sand.u32 %s35, 1
          %s126 = scalar_lea.sflag [#allocation5], %s125
          %s127 = sand.u32 %s35, 1
          %s128 = smul.addr %s127, 8
          %s129 = scalar_lea.vmem [#allocation4], %s128
          %s130 = smul.u32 2, %s19
          %s132 = ssub.s32 128, 128
          %133 = vsyncadd %s126, %s132
          %s134 = smul.addr %s18, 2
          %s135 = sadd.s32 %s130, %s134
          %s136 = smul.addr %s135, 64
          %s137 = scalar_lea.hbm %s0, %s136
          %s139 = sshll.u32 %s129, 4
          %s140 = int_to_ptr.vmem [resolvable:$true] %s139
          %142 = dma.hbm_to_vmem [thread:$0]  %s137, 128, %s140, %s126
        $region20: #{tpu_custom_call.1} parent=15 // pred_fallthru
          _
        // Predicated region
        $region21: #{tpu_custom_call.1} parent=15 // pred_check
          %p143 = pneg %p71
        $region22: #{tpu_custom_call.1} parent=15 // pred_check_branch
          %145 = sbr.rel (%p143) target = $region24
        $region23: #{tpu_custom_call.1} parent=15 // pred_region
          %p146 = scmp.lt.s32.totalorder %s18, 1
          %s147 = scalar_select %p146, %s18, 1
          %s148 = smul.addr %s147, 4
          %s149 = scalar_lea.vmem %s1, %s148
        $region24: #{tpu_custom_call.1} parent=15 // pred_fallthru
          _
      $region16: #{tpu_custom_call.1} parent=5 // pred_fallthru
        _
      %p150 = scmp.le.s32.totalorder 1, %s11
      %p151 = scmp.lt.s32.totalorder %s11, 3
      %p152 = pnand %p150, %p151
      %p153 = pneg %p152
      // Predicated region
      $region25: #{tpu_custom_call.1} parent=5 // pred_check
        _
      $region26: #{tpu_custom_call.1} parent=5 // pred_check_branch
        %155 = sbr.rel (%p152) target = $region28
      $region27: #{tpu_custom_call.1} parent=5 // pred_region
        %s156 = ssub.s32 %s11, 1
        %s157 = sand.u32 %s38, 1
        %s158 = scalar_lea.sflag [#allocation5], %s157
        %s159 = sand.u32 %s38, 1
        %s160 = smul.addr %s159, 8
        %s161 = scalar_lea.vmem [#allocation4], %s160
        // Predicated region
        $region29: #{tpu_custom_call.1} parent=27 // pred_check
          %p162 = pneg %p51
        $region30: #{tpu_custom_call.1} parent=27 // pred_check_branch
          %164 = sbr.rel (%p162) target = $region32
        $region31: #{tpu_custom_call.1} parent=27 // pred_region
          %165 = dma.done %s158, 128
        $region32: #{tpu_custom_call.1} parent=27 // pred_fallthru
          _
        %s166 = sand.u32 %s38, 1
        %s167 = scalar_lea.sflag [#allocation5], %s166
        %s168 = sand.u32 %s38, 1
        %s169 = smul.addr %s168, 8
        %s170 = scalar_lea.vmem [#allocation4], %s169
        %p171 = pneg %p51
        %p172 = pneg %p48
        %p173 = scmp.lt.s32.totalorder %s20, 1
        %s174 = scalar_select %p173, %s20, 1
        %s175 = smul.addr %s174, 4
        %s176 = scalar_lea.vmem %s1, %s175
        %p177 = pneg %p77
        %p178 = pneg %p74
        %p179 = pneg %p103
        %p180 = pneg %p100
        %p181 = scmp.lt.s32.totalorder %s20, 1
        %s182 = scalar_select %p181, %s20, 1
        %s183 = smul.addr %s182, 4
        %s184 = scalar_lea.vmem %s2, %s183
        %s185 = smul.u32 2, %s21
        %p186 = scmp.lt.s32.totalorder %s20, 1
        %s187 = scalar_select %p186, %s20, 1
        %s188 = smul.addr %s187, 4
        %s189 = scalar_lea.vmem %s1, %s188
        %p190 = scmp.lt.s32.totalorder %s20, 1
        %s191 = scalar_select %p190, %s20, 1
        %s192 = smul.addr %s191, 4
        %s193 = scalar_lea.vmem %s2, %s192
        %p194 = scmp.eq.s32.totalorder %s21, 0
        // Predicated region
        $region33: #{tpu_custom_call.1} parent=27 // pred_check
          %p195 = pneg %p194
        $region34: #{tpu_custom_call.1} parent=27 // pred_check_branch
          %197 = sbr.rel (%p195) target = $region36
        $region35: #{tpu_custom_call.1} parent=27 // pred_region
          %vm198 = vcmask 3072
          %199 = vst.msk [vmem:[#allocation2] sm:$0xf] %vm198, 0.0
          %200 = vst.msk [vmem:[#allocation3] sm:$0xf] %vm198, 0.0
        $region36: #{tpu_custom_call.1} parent=27 // pred_fallthru
          _
        %v201 = vld [vmem:[%s161] sm:$0xff]
        %v203 = vcombine.high %v201, %v201
        %vm205 = vcmask 1043456
        %v206 = vsel %vm205, %v201, -inf
        %v207 = vrot.slane %v206, 4
        %v208 = vmax.f32 %v206, %v207
        %v209 = vrot.slane %v208, 2
        %v210 = vmax.f32 %v208, %v209
        %v211 = vrot.slane %v210, 1
        %v212 = vmax.f32 %v210, %v211
        %v213 = vsel %vm205, %v203, -inf
        %v214 = vrot.slane %v213, 4
        %v215 = vmax.f32 %v213, %v214
        %v216 = vrot.slane %v215, 2
        %v217 = vmax.f32 %v215, %v216
        %v218 = vrot.slane %v217, 1
        %v219 = vmax.f32 %v217, %v218
        %v222 = vcombine.low %v212, %v219
        %v224 = vsub.f32 %v201, %v222
        %v225 = vmul.f32 %v224, 1.442695
        %v226 = vpow.pop %v225
        %v228 = vcombine.high %v226, %v226
        %v230 = vsel %vm205, %v226, 0.0
        %v231 = vrot.slane %v230, 4
        %v232 = vadd.f32 %v230, %v231
        %v233 = vrot.slane %v232, 2
        %v234 = vadd.f32 %v232, %v233
        %v235 = vrot.slane %v234, 1
        %v236 = vadd.f32 %v234, %v235
        %v237 = vsel %vm205, %v228, 0.0
        %v238 = vrot.slane %v237, 4
        %v239 = vadd.f32 %v237, %v238
        %v240 = vrot.slane %v239, 2
        %v241 = vadd.f32 %v239, %v240
        %v242 = vrot.slane %v241, 1
        %v243 = vadd.f32 %v241, %v242
        %v244 = vrcp.pop %v236
        %v245 = vrcp.pop %v243
        %v248 = vcombine.low %v244, %v245
        %v250 = vmul.f32 %v226, %v248
        %v251 = vld [vmem:[#allocation2] sm:$0xf]
        %v252 = vmul.f32 %v250, %v201
        %v254 = vcombine.high %v252, %v252
        %v256 = vsel %vm205, %v252, 0.0
        %v257 = vsel %vm205, %v254, 0.0
        %v258 = vadd.f32 %v256, %v257
        %259 = vadd.xlane.f32.xlu0 %v258
        %v260 = vpop.xlane.xlu0 %259
        %v261 = vadd.f32 %v251, %v260
        %vm262 = vcmask 3072
        %263 = vst.msk [vmem:[#allocation2] sm:$0xf] %vm262, %v261
        %v264 = vld [vmem:[#allocation3] sm:$0xf]
        %v266 = vcombine.high %v250, %v250
        %v268 = vsel %vm205, %v250, 0.0
        %v269 = vsel %vm205, %v266, 0.0
        %v270 = vadd.f32 %v268, %v269
        %271 = vadd.xlane.f32.xlu0 %v270
        %v272 = vpop.xlane.xlu0 %271
        %v273 = vadd.f32 %v264, %v272
        %274 = vst.msk [vmem:[#allocation3] sm:$0xf] %vm262, %v273
        // Predicated region
        $region37: #{tpu_custom_call.1} parent=27 // pred_check
          %p275 = pneg %p194
        $region38: #{tpu_custom_call.1} parent=27 // pred_check_branch
          %277 = sbr.rel (%p275) target = $region40
        $region39: #{tpu_custom_call.1} parent=27 // pred_region
          %v278 = vld [vmem:[#allocation2] sm:$0xf]
          %v279 = vld [vmem:[#allocation3] sm:$0xf]
          %v280 = vrcp.pop %v279
          %v281 = vmul.f32 %v278, %v280
          %v282 = vadd.f32 %v281, 1e-06
          %v283 = vmul.f32 %v279, 0.00390625
          %v284 = vsub.f32 1.0, %v283
          %v285 = vmul.f32 %v284, %v284
          %v286 = vmul.f32 %v285, %v284
          %v287 = vadd.f32 %v283, 0.01
          %v288 = vlog2.pop %v287
          %v289 = vmul.f32 %v288, 0.6931472
          %v290 = vmul.f32 %v286, %v289
          %v291 = vadd.f32 %v282, %v290
          %v292 = vxor.u32 %v291, 2147483648
          %v293 = vmul.f32 %v292, 1.442695
          %v294 = vpow.pop %v293
          %v295 = vadd.f32 %v294, 1.0
          %v296 = vrcp.pop %v295
          %v297 = vmul.f32 1.0, %v296
          %v298 = vld [vmem:[%s189] sm:$0xf]
          %v299 = vlog2.pop %v297
          %v300 = vmul.f32 %v299, 0.6931472
          %v301 = vmax.f32 %v300, -100.0
          %v302 = vsub.f32 1.0, %v297
          %v303 = vlog2.pop %v302
          %v304 = vmul.f32 %v303, 0.6931472
          %v305 = vmax.f32 %v304, -100.0
          %v306 = vmul.f32 %v298, %v301
          %v307 = vsub.f32 1.0, %v298
          %v308 = vmul.f32 %v307, %v305
          %v309 = vadd.f32 %v306, %v308
          %v310 = vsub.f32 0.0, %v309
          %311 = vst.msk [vmem:[%s193] sm:$0xf] %vm262, %v310
        $region40: #{tpu_custom_call.1} parent=27 // pred_fallthru
          _
        %p312 = scmp.lt.s32.totalorder %s20, 1
        %s313 = scalar_select %p312, %s20, 1
        %s314 = smul.addr %s313, 4
        %s315 = scalar_lea.vmem %s2, %s314
        // Predicated region
        $region41: #{tpu_custom_call.1} parent=27 // pred_check
          %p316 = pneg %p100
        $region42: #{tpu_custom_call.1} parent=27 // pred_check_branch
          %318 = sbr.rel (%p316) target = $region44
        $region43: #{tpu_custom_call.1} parent=27 // pred_region
          _
        $region44: #{tpu_custom_call.1} parent=27 // pred_fallthru
          _
      $region28: #{tpu_custom_call.1} parent=5 // pred_fallthru
        _
      %p319 = scmp.le.s32.totalorder 2, %s11
      // Predicated region
      $region45: #{tpu_custom_call.1} parent=5 // pred_check
        %p320 = pneg %p319
      $region46: #{tpu_custom_call.1} parent=5 // pred_check_branch
        %322 = sbr.rel (%p320) target = $region48
      $region47: #{tpu_custom_call.1} parent=5 // pred_region
        %s323 = ssub.s32 %s11, 2
        // Predicated region
        $region49: #{tpu_custom_call.1} parent=47 // pred_check
          %p324 = pneg %p106
        $region50: #{tpu_custom_call.1} parent=47 // pred_check_branch
          %326 = sbr.rel (%p324) target = $region52
        $region51: #{tpu_custom_call.1} parent=47 // pred_region
          %p327 = scmp.lt.s32.totalorder %s22, 1
          %s328 = scalar_select %p327, %s22, 1
          %s329 = smul.addr %s328, 4
          %s330 = scalar_lea.vmem %s2, %s329
        $region52: #{tpu_custom_call.1} parent=47 // pred_fallthru
          _
      $region48: #{tpu_custom_call.1} parent=5 // pred_fallthru
        _
    $region6: #{tpu_custom_call.1} parent=1 // loop_footer
      %s15 = sadd.s32 1, %s11
    $region7: #{tpu_custom_call.1} parent=1 // loop_footer_branch
      %10 = sbr.rel target = $region3
    $region8: #{tpu_custom_call.1} parent=1 // loop_exit
      _
    %331 = vsyncpa [#allocation5], 1
    %s332 = scalar_lea.sflag [#allocation5], 1
    %333 = vsyncpa %s332, 1

</llo_original>
